<compile_context>
chip_gen: v7x
topology: tpu7x:2x2x1
jax: 0.10.0
libtpu: 0.0.40
codegen_flags: <defaults>
</compile_context>

<pallas_src>
import jax
import jax.numpy as jnp
from jax.experimental import pallas as pl
from jax.experimental.pallas import tpu as pltpu


def aggregate_kernel(n_ref, e_ref, w_ref, b_ref, o_ref):
    # n_ref: (Bt, N, I1)   e_ref: (Bt, N, I2)   w_ref: (I1*I2, O)
    # b_ref: (1, O) f32    o_ref: (Bt, O)
    bt, n_nbrs, i1 = n_ref.shape
    i2 = e_ref.shape[2]
    o_dim = o_ref.shape[1]
    m = bt * n_nbrs

    # Leading-dim collapse only (layout-free).
    x1 = n_ref[...].reshape(m, i1)                       # (M, I1)
    x2 = e_ref[...].reshape(m, i2)                       # (M, I2)

    # Row-wise outer product, lane-dense: z[:, j*I1 + i] = x2[:, j] * x1[:, i].
    # Each piece is a lane-broadcast + VPU multiply; concat packs the lanes.
    z = jnp.concatenate([x1 * x2[:, j:j + 1] for j in range(i2)], axis=1)
    z = z.astype(w_ref.dtype)                            # bf16 MXU path if requested

    # Single deep-K matmul: K = I1*I2, f32 accumulation.
    acc = jnp.dot(z, w_ref[...], preferred_element_type=jnp.float32)   # (M, O)

    act = jnp.maximum(acc + b_ref[...], 0.0)             # bias + ReLU, f32
    # max over the neighbor axis (torch dim=-2); leading-dim split only.
    o_ref[...] = jnp.max(act.reshape(bt, n_nbrs, o_dim), axis=1).astype(o_ref.dtype)


def prepare_params(weight, bias, mxu_dtype=None):
    """Do the weight transpose/reshape ONCE at parameter-setup time.

    weight (O, I1, I2), bias (O,) ->
      w2 (I1*I2, O) with w2[j*I1 + i, o] = weight[o, i, j]
      b2 (1, O) float32
    """
    o_dim, i1, i2 = weight.shape
    w2 = jnp.transpose(weight, (2, 1, 0)).reshape(i1 * i2, o_dim)
    if mxu_dtype is not None:
        w2 = w2.astype(mxu_dtype)
    b2 = bias.reshape(1, o_dim).astype(jnp.float32)
    return w2, b2


def _pick_b_tile(B, N, m_target):
    """Batch rows per grid step: target ~m_target matmul rows, 8-aligned output
    sublanes, and >=2 grid steps when cleanly possible (v7x has 2 TCs)."""
    bt = max(1, m_target // max(N, 1))
    if bt >= B:
        half = B // 2
        if B % 2 == 0 and half % 8 == 0:
            return half            # two balanced blocks for the 2-TC case
        return B                   # single full-batch block
    return max(8, (bt // 8) * 8)   # multiple of 8 (output sublane constraint)


def aggregate(neighbors, edges, w2, b2, *, b_tile=None, m_target=2048):
    """neighbors (B,N,I1), edges (B,N,I2), prepared w2 (I1*I2,O), b2 (1,O) -> (B,O)."""
    B, N, I1 = neighbors.shape
    I2 = edges.shape[2]
    K, O = w2.shape
    assert K == I1 * I2, "w2 must be prepared with prepare_params()"

    if b_tile is None:
        b_tile = _pick_b_tile(B, N, m_target)
    else:
        b_tile = int(b_tile)
        if b_tile >= B:
            b_tile = B
        elif b_tile % 8 != 0:
            b_tile = min(max(8, (b_tile // 8) * 8), B)
    n_blocks = pl.cdiv(B, b_tile)    # ragged last block handled by Pallas masking

    return pl.pallas_call(
        aggregate_kernel,
        out_shape=jax.ShapeDtypeStruct((B, O), neighbors.dtype),
        grid=(n_blocks,),
        in_specs=[
            pl.BlockSpec((b_tile, N, I1), lambda b: (b, 0, 0)),
            pl.BlockSpec((b_tile, N, I2), lambda b: (b, 0, 0)),
            pl.BlockSpec((I1 * I2, O), lambda b: (0, 0)),   # weight: VMEM-resident
            pl.BlockSpec((1, O), lambda b: (0, 0)),         # bias:   VMEM-resident
        ],
        out_specs=pl.BlockSpec((b_tile, O), lambda b: (b, 0)),
        compiler_params=pltpu.CompilerParams(
            dimension_semantics=("parallel",),
            vmem_limit_bytes=32 * 1024 * 1024,
        ),
    )(neighbors, edges, w2, b2)


def reference(neighbors, edges, weight, bias):
    middle = jnp.einsum("bni,oij,bnj->bno", neighbors, weight, edges) + bias
    return jnp.max(jax.nn.relu(middle), axis=-2)


if __name__ == "__main__":
    # small shapes consistent with the module
    B, N = 2, 8              # batch, number of neighbors (the dim reduced by max)
    I1, I2, O = 32, 16, 64   # input1_dim, input2_dim, bilinear_output_dim

    key = jax.random.PRNGKey(0)
    k_n, k_e, k_w, k_b = jax.random.split(key, 4)

    # deterministic parameter init (mirrors nn.Bilinear's uniform(-1/sqrt(I1), 1/sqrt(I1)))
    bound = 1.0 / (I1 ** 0.5)
    weight = jax.random.uniform(k_w, (O, I1, I2), jnp.float32, -bound, bound)
    bias = jax.random.uniform(k_b, (O,), jnp.float32, -bound, bound)

    neighbors = jax.random.normal(k_n, (B, N, I1), jnp.float32)
    edges = jax.random.normal(k_e, (B, N, I2), jnp.float32)

    # parameters prepared once (not per forward call)
    w2, b2 = prepare_params(weight, bias)   # f32 MXU path (matches reference tol)

    out = jax.block_until_ready(aggregate(neighbors, edges, w2, b2))
    ref = reference(neighbors, edges, weight, bias)
    assert out.shape == (B, O)
    assert jnp.allclose(out, ref, rtol=1e-4, atol=1e-4), "mismatch vs reference"

    # extra check: multi-block grid with a ragged last block (no wrapper padding)
    B2 = 20
    k_n2, k_e2 = jax.random.split(k_n, 2)
    nb2 = jax.random.normal(k_n2, (B2, N, I1), jnp.float32)
    ed2 = jax.random.normal(k_e2, (B2, N, I2), jnp.float32)
    out2 = jax.block_until_ready(aggregate(nb2, ed2, w2, b2, b_tile=8))
    ref2 = reference(nb2, ed2, weight, bias)
    assert out2.shape == (B2, O)
    assert jnp.allclose(out2, ref2, rtol=1e-4, atol=1e-4), "mismatch vs reference (ragged blocks)"

    print("KERNEL_OK")
</pallas_src>

<mosaic_0001>
module attributes {stable_mosaic.version = 11 : i64} {
  func.func @aggregate_kernel(%arg0: i32, %arg1: memref<2x8x32xf32, #tpu.memory_space<vmem>>, %arg2: memref<2x8x16xf32, #tpu.memory_space<vmem>>, %arg3: memref<512x64xf32, #tpu.memory_space<vmem>>, %arg4: memref<1x64xf32, #tpu.memory_space<vmem>>, %arg5: memref<2x64xf32, #tpu.memory_space<vmem>>) attributes {dimension_semantics = [#tpu.dimension_semantics<parallel>], iteration_bounds = array<i64: 1>, scalar_prefetch = 0 : i64, scratch_operands = 0 : i64, tpu.core_type = #tpu.core_type<tc>, window_params = [{transform_indices = @transform_0, window_bounds = array<i64: 2, 8, 32>}, {transform_indices = @transform_1, window_bounds = array<i64: 2, 8, 16>}, {pipeline_mode = #tpu.pipeline_mode<synchronous>, transform_indices = @transform_2, window_bounds = array<i64: 512, 64>}, {pipeline_mode = #tpu.pipeline_mode<synchronous>, transform_indices = @transform_3, window_bounds = array<i64: 1, 64>}, {transform_indices = @transform_4, window_bounds = array<i64: 2, 64>}]} {
    %c0 = arith.constant 0 : index
    %c0_0 = arith.constant 0 : index
    %c0_1 = arith.constant 0 : index
    %0 = vector.load %arg1[%c0, %c0_0, %c0_1] : memref<2x8x32xf32, #tpu.memory_space<vmem>>, vector<2x8x32xf32>
    %1 = vector.shape_cast %0 : vector<2x8x32xf32> to vector<16x32xf32>
    %c0_2 = arith.constant 0 : index
    %c0_3 = arith.constant 0 : index
    %c0_4 = arith.constant 0 : index
    %2 = vector.load %arg2[%c0_2, %c0_3, %c0_4] : memref<2x8x16xf32, #tpu.memory_space<vmem>>, vector<2x8x16xf32>
    %3 = vector.shape_cast %2 : vector<2x8x16xf32> to vector<16x16xf32>
    %4 = vector.extract_strided_slice %3 {offsets = [0, 0], sizes = [16, 1], strides = [1, 1]} : vector<16x16xf32> to vector<16x1xf32>
    %5 = vector.broadcast %4 : vector<16x1xf32> to vector<16x32xf32>
    %6 = arith.mulf %1, %5 : vector<16x32xf32>
    %7 = vector.extract_strided_slice %3 {offsets = [0, 1], sizes = [16, 1], strides = [1, 1]} : vector<16x16xf32> to vector<16x1xf32>
    %8 = vector.broadcast %7 : vector<16x1xf32> to vector<16x32xf32>
    %9 = arith.mulf %1, %8 : vector<16x32xf32>
    %10 = vector.extract_strided_slice %3 {offsets = [0, 2], sizes = [16, 1], strides = [1, 1]} : vector<16x16xf32> to vector<16x1xf32>
    %11 = vector.broadcast %10 : vector<16x1xf32> to vector<16x32xf32>
    %12 = arith.mulf %1, %11 : vector<16x32xf32>
    %13 = vector.extract_strided_slice %3 {offsets = [0, 3], sizes = [16, 1], strides = [1, 1]} : vector<16x16xf32> to vector<16x1xf32>
    %14 = vector.broadcast %13 : vector<16x1xf32> to vector<16x32xf32>
    %15 = arith.mulf %1, %14 : vector<16x32xf32>
    %16 = vector.extract_strided_slice %3 {offsets = [0, 4], sizes = [16, 1], strides = [1, 1]} : vector<16x16xf32> to vector<16x1xf32>
    %17 = vector.broadcast %16 : vector<16x1xf32> to vector<16x32xf32>
    %18 = arith.mulf %1, %17 : vector<16x32xf32>
    %19 = vector.extract_strided_slice %3 {offsets = [0, 5], sizes = [16, 1], strides = [1, 1]} : vector<16x16xf32> to vector<16x1xf32>
    %20 = vector.broadcast %19 : vector<16x1xf32> to vector<16x32xf32>
    %21 = arith.mulf %1, %20 : vector<16x32xf32>
    %22 = vector.extract_strided_slice %3 {offsets = [0, 6], sizes = [16, 1], strides = [1, 1]} : vector<16x16xf32> to vector<16x1xf32>
    %23 = vector.broadcast %22 : vector<16x1xf32> to vector<16x32xf32>
    %24 = arith.mulf %1, %23 : vector<16x32xf32>
    %25 = vector.extract_strided_slice %3 {offsets = [0, 7], sizes = [16, 1], strides = [1, 1]} : vector<16x16xf32> to vector<16x1xf32>
    %26 = vector.broadcast %25 : vector<16x1xf32> to vector<16x32xf32>
    %27 = arith.mulf %1, %26 : vector<16x32xf32>
    %28 = vector.extract_strided_slice %3 {offsets = [0, 8], sizes = [16, 1], strides = [1, 1]} : vector<16x16xf32> to vector<16x1xf32>
    %29 = vector.broadcast %28 : vector<16x1xf32> to vector<16x32xf32>
    %30 = arith.mulf %1, %29 : vector<16x32xf32>
    %31 = vector.extract_strided_slice %3 {offsets = [0, 9], sizes = [16, 1], strides = [1, 1]} : vector<16x16xf32> to vector<16x1xf32>
    %32 = vector.broadcast %31 : vector<16x1xf32> to vector<16x32xf32>
    %33 = arith.mulf %1, %32 : vector<16x32xf32>
    %34 = vector.extract_strided_slice %3 {offsets = [0, 10], sizes = [16, 1], strides = [1, 1]} : vector<16x16xf32> to vector<16x1xf32>
    %35 = vector.broadcast %34 : vector<16x1xf32> to vector<16x32xf32>
    %36 = arith.mulf %1, %35 : vector<16x32xf32>
    %37 = vector.extract_strided_slice %3 {offsets = [0, 11], sizes = [16, 1], strides = [1, 1]} : vector<16x16xf32> to vector<16x1xf32>
    %38 = vector.broadcast %37 : vector<16x1xf32> to vector<16x32xf32>
    %39 = arith.mulf %1, %38 : vector<16x32xf32>
    %40 = vector.extract_strided_slice %3 {offsets = [0, 12], sizes = [16, 1], strides = [1, 1]} : vector<16x16xf32> to vector<16x1xf32>
    %41 = vector.broadcast %40 : vector<16x1xf32> to vector<16x32xf32>
    %42 = arith.mulf %1, %41 : vector<16x32xf32>
    %43 = vector.extract_strided_slice %3 {offsets = [0, 13], sizes = [16, 1], strides = [1, 1]} : vector<16x16xf32> to vector<16x1xf32>
    %44 = vector.broadcast %43 : vector<16x1xf32> to vector<16x32xf32>
    %45 = arith.mulf %1, %44 : vector<16x32xf32>
    %46 = vector.extract_strided_slice %3 {offsets = [0, 14], sizes = [16, 1], strides = [1, 1]} : vector<16x16xf32> to vector<16x1xf32>
    %47 = vector.broadcast %46 : vector<16x1xf32> to vector<16x32xf32>
    %48 = arith.mulf %1, %47 : vector<16x32xf32>
    %49 = vector.extract_strided_slice %3 {offsets = [0, 15], sizes = [16, 1], strides = [1, 1]} : vector<16x16xf32> to vector<16x1xf32>
    %50 = vector.broadcast %49 : vector<16x1xf32> to vector<16x32xf32>
    %51 = arith.mulf %1, %50 : vector<16x32xf32>
    %52 = tpu.concatenate %6, %9, %12, %15, %18, %21, %24, %27, %30, %33, %36, %39, %42, %45, %48, %51 in 1 : vector<16x32xf32>, vector<16x32xf32>, vector<16x32xf32>, vector<16x32xf32>, vector<16x32xf32>, vector<16x32xf32>, vector<16x32xf32>, vector<16x32xf32>, vector<16x32xf32>, vector<16x32xf32>, vector<16x32xf32>, vector<16x32xf32>, vector<16x32xf32>, vector<16x32xf32>, vector<16x32xf32>, vector<16x32xf32> -> vector<16x512xf32>
    %c0_5 = arith.constant 0 : index
    %c0_6 = arith.constant 0 : index
    %53 = vector.load %arg3[%c0_5, %c0_6] : memref<512x64xf32, #tpu.memory_space<vmem>>, vector<512x64xf32>
    %cst = arith.constant dense<0.000000e+00> : vector<16x64xf32>
    %54 = tpu.matmul %52, %53, %cst {dimension_numbers = #tpu.dot_dimension_numbers<[1], [0], [0], [1], [0, 0, 1, 1], [], []>} : vector<16x512xf32>, vector<512x64xf32>, vector<16x64xf32> -> vector<16x64xf32>
    %c0_7 = arith.constant 0 : index
    %c0_8 = arith.constant 0 : index
    %55 = vector.load %arg4[%c0_7, %c0_8] : memref<1x64xf32, #tpu.memory_space<vmem>>, vector<1x64xf32>
    %56 = vector.broadcast %55 : vector<1x64xf32> to vector<16x64xf32>
    %57 = arith.addf %54, %56 : vector<16x64xf32>
    %cst_9 = arith.constant 0.000000e+00 : f32
    %58 = vector.broadcast %cst_9 : f32 to vector<16x64xf32>
    %59 = arith.maximumf %57, %58 : vector<16x64xf32>
    %60 = vector.shape_cast %59 : vector<16x64xf32> to vector<2x8x64xf32>
    %cst_10 = arith.constant dense<0xFF800000> : vector<2x64xf32>
    %61 = vector.multi_reduction <maximumf>, %60, %cst_10 [1] : vector<2x8x64xf32> to vector<2x64xf32>
    %c0_11 = arith.constant 0 : index
    %c0_12 = arith.constant 0 : index
    %62 = vector.load %arg5[%c0_11, %c0_12] : memref<2x64xf32, #tpu.memory_space<vmem>>, vector<2x64xf32>
    tpu.vector_store %arg5[%c0_11, %c0_12], %61 {strides = array<i32>} : memref<2x64xf32, #tpu.memory_space<vmem>>, vector<2x64xf32>,
    return
  }
  func.func @transform_0(%arg0: i32) -> (i32, i32, i32) {
    %c0_i32 = arith.constant 0 : i32
    %c0_i32_0 = arith.constant 0 : i32
    %c0_i32_1 = arith.constant 0 : i32
    return %arg0, %c0_i32, %c0_i32_0 : i32, i32, i32
  }
  func.func @transform_1(%arg0: i32) -> (i32, i32, i32) {
    %c0_i32 = arith.constant 0 : i32
    %c0_i32_0 = arith.constant 0 : i32
    %c0_i32_1 = arith.constant 0 : i32
    return %arg0, %c0_i32, %c0_i32_0 : i32, i32, i32
  }
  func.func @transform_2(%arg0: i32) -> (i32, i32) {
    %c0_i32 = arith.constant 0 : i32
    %c0_i32_0 = arith.constant 0 : i32
    %c0_i32_1 = arith.constant 0 : i32
    return %c0_i32, %c0_i32_0 : i32, i32
  }
  func.func @transform_3(%arg0: i32) -> (i32, i32) {
    %c0_i32 = arith.constant 0 : i32
    %c0_i32_0 = arith.constant 0 : i32
    %c0_i32_1 = arith.constant 0 : i32
    return %c0_i32, %c0_i32_0 : i32, i32
  }
  func.func @transform_4(%arg0: i32) -> (i32, i32) {
    %c0_i32 = arith.constant 0 : i32
    %c0_i32_0 = arith.constant 0 : i32
    return %arg0, %c0_i32 : i32, i32
  }
}

</mosaic_0001>

<llo_original>
// kernel: tpu_custom_call.1
$region0: #{tpu_custom_call.1}
  #allocation0 [shape = 'u32[]', space=smem, size = 0x4, offset = 0x4, fixed_abs, tag = 'smem constant byte address 0x4 - core index']
  #allocation1 [shape = 'u32[144,128]{1,0:T(1,128)}', space=vmem, size = 0x12000, scoped, tag = 'internal scratch']
  %s0 = inlined_call_operand.vmem [shape: f32[2,8,32], index: 0, kind: input, shape index: {}]
  %s1 = inlined_call_operand.vmem [shape: f32[2,8,16], index: 1, kind: input, shape index: {}]
  %s2 = inlined_call_operand.vmem [shape: f32[512,64], index: 2, kind: input, shape index: {}]
  %s3 = inlined_call_operand.vmem [shape: f32[1,64], index: 3, kind: input, shape index: {}]
  %s4 = inlined_call_operand.hbm [shape: f32[2,64], index: 4, kind: output, shape index: {}]
  %s5 = sld [smem:[#allocation0]]
  $region26: #{tpu_custom_call.1} parent=0
    _
  %s7 = ssub.s32 1, %s5
  %s8 = scalar_select 0, %s7, %s5
  $region1: #{tpu_custom_call.1} parent=0
    #allocation2 [shape = 'u8[1024]{0}', space=vmem, size = 0x400, scoped, tag = 'output window, operand 0, single buffered']
    #allocation3 [shape = 's32[1]{0}', space=sflag, size = 0x4, scoped, tag = 'scoped memory for tpu_custom_call.1']
    %9 = vsyncpa [#allocation3], 0
    // Predicated region
    $region2: #{tpu_custom_call.1} parent=1 // pred_check
      _
    $region3: #{tpu_custom_call.1} parent=1 // pred_check_branch
      %11 = sbr.rel (0) target = $region5
    $region4: #{tpu_custom_call.1} parent=1 // pred_region
      _
    $region5: #{tpu_custom_call.1} parent=1 // pred_fallthru
      _
    // Predicated region
    $region6: #{tpu_custom_call.1} parent=1 // pred_check
      _
    $region7: #{tpu_custom_call.1} parent=1 // pred_check_branch
      %13 = sbr.rel (0) target = $region9
    $region8: #{tpu_custom_call.1} parent=1 // pred_region
      _
    $region9: #{tpu_custom_call.1} parent=1 // pred_fallthru
      _
    // Predicated region
    $region10: #{tpu_custom_call.1} parent=1 // pred_check
      _
    $region11: #{tpu_custom_call.1} parent=1 // pred_check_branch
      %15 = sbr.rel (0) target = $region13
    $region12: #{tpu_custom_call.1} parent=1 // pred_region
      _
    $region13: #{tpu_custom_call.1} parent=1 // pred_fallthru
      _
    // Predicated region
    $region14: #{tpu_custom_call.1} parent=1 // pred_check
      _
    $region15: #{tpu_custom_call.1} parent=1 // pred_check_branch
      %17 = sbr.rel (0) target = $region17
    $region16: #{tpu_custom_call.1} parent=1 // pred_region
      _
    $region17: #{tpu_custom_call.1} parent=1 // pred_fallthru
      _
    %v18 = vld [vmem:[%s0] sm:$0xff]
    %v19 = vld [vmem:[%s0 + $0x8] sm:$0xff]
    %v20 = vld [vmem:[%s1] sm:$0xff]
    %v21 = vld [vmem:[%s1 + $0x8] sm:$0xff]
    %23 = vset.pattern.permute.xlu0 0
    %24 = vperm.xlu0 %23, %v20
    %v25 = vpop.permute.xlu0 %24
    %28 = vset.pattern.permute.xlu0 0
    %29 = vperm.xlu0 %28, %v21
    %v30 = vpop.permute.xlu0 %29
    %v32 = vmul.f32 %v18, %v25
    %v33 = vmul.f32 %v19, %v30
    %34 = vset.pattern.permute.xlu0 1
    %35 = vperm.xlu0 %34, %v20
    %v36 = vpop.permute.xlu0 %35
    %38 = vset.pattern.permute.xlu0 1
    %39 = vperm.xlu0 %38, %v21
    %v40 = vpop.permute.xlu0 %39
    %v42 = vmul.f32 %v18, %v36
    %v43 = vmul.f32 %v19, %v40
    %44 = vset.pattern.permute.xlu0 2
    %45 = vperm.xlu0 %44, %v20
    %v46 = vpop.permute.xlu0 %45
    %48 = vset.pattern.permute.xlu0 2
    %49 = vperm.xlu0 %48, %v21
    %v50 = vpop.permute.xlu0 %49
    %v52 = vmul.f32 %v18, %v46
    %v53 = vmul.f32 %v19, %v50
    %54 = vset.pattern.permute.xlu0 3
    %55 = vperm.xlu0 %54, %v20
    %v56 = vpop.permute.xlu0 %55
    %58 = vset.pattern.permute.xlu0 3
    %59 = vperm.xlu0 %58, %v21
    %v60 = vpop.permute.xlu0 %59
    %v62 = vmul.f32 %v18, %v56
    %v63 = vmul.f32 %v19, %v60
    %64 = vset.pattern.permute.xlu0 4
    %65 = vperm.xlu0 %64, %v20
    %v66 = vpop.permute.xlu0 %65
    %68 = vset.pattern.permute.xlu0 4
    %69 = vperm.xlu0 %68, %v21
    %v70 = vpop.permute.xlu0 %69
    %v72 = vmul.f32 %v18, %v66
    %v73 = vmul.f32 %v19, %v70
    %74 = vset.pattern.permute.xlu0 5
    %75 = vperm.xlu0 %74, %v20
    %v76 = vpop.permute.xlu0 %75
    %78 = vset.pattern.permute.xlu0 5
    %79 = vperm.xlu0 %78, %v21
    %v80 = vpop.permute.xlu0 %79
    %v82 = vmul.f32 %v18, %v76
    %v83 = vmul.f32 %v19, %v80
    %84 = vset.pattern.permute.xlu0 6
    %85 = vperm.xlu0 %84, %v20
    %v86 = vpop.permute.xlu0 %85
    %88 = vset.pattern.permute.xlu0 6
    %89 = vperm.xlu0 %88, %v21
    %v90 = vpop.permute.xlu0 %89
    %v92 = vmul.f32 %v18, %v86
    %v93 = vmul.f32 %v19, %v90
    %94 = vset.pattern.permute.xlu0 7
    %95 = vperm.xlu0 %94, %v20
    %v96 = vpop.permute.xlu0 %95
    %98 = vset.pattern.permute.xlu0 7
    %99 = vperm.xlu0 %98, %v21
    %v100 = vpop.permute.xlu0 %99
    %v102 = vmul.f32 %v18, %v96
    %v103 = vmul.f32 %v19, %v100
    %104 = vset.pattern.permute.xlu0 8
    %105 = vperm.xlu0 %104, %v20
    %v106 = vpop.permute.xlu0 %105
    %108 = vset.pattern.permute.xlu0 8
    %109 = vperm.xlu0 %108, %v21
    %v110 = vpop.permute.xlu0 %109
    %v112 = vmul.f32 %v18, %v106
    %v113 = vmul.f32 %v19, %v110
    %114 = vset.pattern.permute.xlu0 9
    %115 = vperm.xlu0 %114, %v20
    %v116 = vpop.permute.xlu0 %115
    %118 = vset.pattern.permute.xlu0 9
    %119 = vperm.xlu0 %118, %v21
    %v120 = vpop.permute.xlu0 %119
    %v122 = vmul.f32 %v18, %v116
    %v123 = vmul.f32 %v19, %v120
    %124 = vset.pattern.permute.xlu0 10
    %125 = vperm.xlu0 %124, %v20
    %v126 = vpop.permute.xlu0 %125
    %128 = vset.pattern.permute.xlu0 10
    %129 = vperm.xlu0 %128, %v21
    %v130 = vpop.permute.xlu0 %129
    %v132 = vmul.f32 %v18, %v126
    %v133 = vmul.f32 %v19, %v130
    %134 = vset.pattern.permute.xlu0 11
    %135 = vperm.xlu0 %134, %v20
    %v136 = vpop.permute.xlu0 %135
    %138 = vset.pattern.permute.xlu0 11
    %139 = vperm.xlu0 %138, %v21
    %v140 = vpop.permute.xlu0 %139
    %v142 = vmul.f32 %v18, %v136
    %v143 = vmul.f32 %v19, %v140
    %144 = vset.pattern.permute.xlu0 12
    %145 = vperm.xlu0 %144, %v20
    %v146 = vpop.permute.xlu0 %145
    %148 = vset.pattern.permute.xlu0 12
    %149 = vperm.xlu0 %148, %v21
    %v150 = vpop.permute.xlu0 %149
    %v152 = vmul.f32 %v18, %v146
    %v153 = vmul.f32 %v19, %v150
    %154 = vset.pattern.permute.xlu0 13
    %155 = vperm.xlu0 %154, %v20
    %v156 = vpop.permute.xlu0 %155
    %158 = vset.pattern.permute.xlu0 13
    %159 = vperm.xlu0 %158, %v21
    %v160 = vpop.permute.xlu0 %159
    %v162 = vmul.f32 %v18, %v156
    %v163 = vmul.f32 %v19, %v160
    %164 = vset.pattern.permute.xlu0 14
    %165 = vperm.xlu0 %164, %v20
    %v166 = vpop.permute.xlu0 %165
    %168 = vset.pattern.permute.xlu0 14
    %169 = vperm.xlu0 %168, %v21
    %v170 = vpop.permute.xlu0 %169
    %v172 = vmul.f32 %v18, %v166
    %v173 = vmul.f32 %v19, %v170
    %174 = vset.pattern.permute.xlu0 15
    %175 = vperm.xlu0 %174, %v20
    %v176 = vpop.permute.xlu0 %175
    %178 = vset.pattern.permute.xlu0 15
    %179 = vperm.xlu0 %178, %v21
    %v180 = vpop.permute.xlu0 %179
    %v182 = vmul.f32 %v18, %v176
    %v183 = vmul.f32 %v19, %v180
    %186 = vrot.lane.b32.xlu0 %v42, 32
    %v187 = vpop.permute.xlu0 %186
    %188 = vrot.lane.b32.xlu0 %v43, 32
    %v189 = vpop.permute.xlu0 %188
    %194 = vrot.lane.b32.xlu0 %v52, 64
    %v195 = vpop.permute.xlu0 %194
    %196 = vrot.lane.b32.xlu0 %v53, 64
    %v197 = vpop.permute.xlu0 %196
    %202 = vrot.lane.b32.xlu0 %v62, 96
    %v203 = vpop.permute.xlu0 %202
    %204 = vrot.lane.b32.xlu0 %v63, 96
    %v205 = vpop.permute.xlu0 %204
    %210 = vrot.lane.b32.xlu0 %v82, 32
    %v211 = vpop.permute.xlu0 %210
    %212 = vrot.lane.b32.xlu0 %v83, 32
    %v213 = vpop.permute.xlu0 %212
    %218 = vrot.lane.b32.xlu0 %v92, 64
    %v219 = vpop.permute.xlu0 %218
    %220 = vrot.lane.b32.xlu0 %v93, 64
    %v221 = vpop.permute.xlu0 %220
    %226 = vrot.lane.b32.xlu0 %v102, 96
    %v227 = vpop.permute.xlu0 %226
    %228 = vrot.lane.b32.xlu0 %v103, 96
    %v229 = vpop.permute.xlu0 %228
    %234 = vrot.lane.b32.xlu0 %v122, 32
    %v235 = vpop.permute.xlu0 %234
    %236 = vrot.lane.b32.xlu0 %v123, 32
    %v237 = vpop.permute.xlu0 %236
    %242 = vrot.lane.b32.xlu0 %v132, 64
    %v243 = vpop.permute.xlu0 %242
    %244 = vrot.lane.b32.xlu0 %v133, 64
    %v245 = vpop.permute.xlu0 %244
    %250 = vrot.lane.b32.xlu0 %v142, 96
    %v251 = vpop.permute.xlu0 %250
    %252 = vrot.lane.b32.xlu0 %v143, 96
    %v253 = vpop.permute.xlu0 %252
    %258 = vrot.lane.b32.xlu0 %v162, 32
    %v259 = vpop.permute.xlu0 %258
    %260 = vrot.lane.b32.xlu0 %v163, 32
    %v261 = vpop.permute.xlu0 %260
    %266 = vrot.lane.b32.xlu0 %v172, 64
    %v267 = vpop.permute.xlu0 %266
    %268 = vrot.lane.b32.xlu0 %v173, 64
    %v269 = vpop.permute.xlu0 %268
    %274 = vrot.lane.b32.xlu0 %v182, 96
    %v275 = vpop.permute.xlu0 %274
    %276 = vrot.lane.b32.xlu0 %v183, 96
    %v277 = vpop.permute.xlu0 %276
    %vm280 = vcmask 261120
    %v281 = vsel %vm280, %v32, %v187
    %v282 = vsel %vm280, %v33, %v189
    %vm283 = vcmask 523264
    %v284 = vsel %vm283, %v281, %v195
    %v285 = vsel %vm283, %v282, %v197
    %vm286 = vcmask 785408
    %v287 = vsel %vm286, %v284, %v203
    %v288 = vsel %vm286, %v285, %v205
    %v289 = vsel %vm280, %v72, %v211
    %v290 = vsel %vm280, %v73, %v213
    %v291 = vsel %vm283, %v289, %v219
    %v292 = vsel %vm283, %v290, %v221
    %v293 = vsel %vm286, %v291, %v227
    %v294 = vsel %vm286, %v292, %v229
    %v295 = vsel %vm280, %v112, %v235
    %v296 = vsel %vm280, %v113, %v237
    %v297 = vsel %vm283, %v295, %v243
    %v298 = vsel %vm283, %v296, %v245
    %v299 = vsel %vm286, %v297, %v251
    %v300 = vsel %vm286, %v298, %v253
    %v301 = vsel %vm280, %v152, %v259
    %v302 = vsel %vm280, %v153, %v261
    %v303 = vsel %vm283, %v301, %v267
    %v304 = vsel %vm283, %v302, %v269
    %v305 = vsel %vm286, %v303, %v275
    %v306 = vsel %vm286, %v304, %v277
    %v307 = vld [vmem:[%s2] sm:$0xff]
    %v308 = vld [vmem:[%s2 + $0x8] sm:$0xff]
    %v309 = vld [vmem:[%s2 + $0x10] sm:$0xff]
    %v310 = vld [vmem:[%s2 + $0x18] sm:$0xff]
    %v311 = vld [vmem:[%s2 + $0x20] sm:$0xff]
    %v312 = vld [vmem:[%s2 + $0x28] sm:$0xff]
    %v313 = vld [vmem:[%s2 + $0x30] sm:$0xff]
    %v314 = vld [vmem:[%s2 + $0x38] sm:$0xff]
    %v315 = vld [vmem:[%s2 + $0x40] sm:$0xff]
    %v316 = vld [vmem:[%s2 + $0x48] sm:$0xff]
    %v317 = vld [vmem:[%s2 + $0x50] sm:$0xff]
    %v318 = vld [vmem:[%s2 + $0x58] sm:$0xff]
    %v319 = vld [vmem:[%s2 + $0x60] sm:$0xff]
    %v320 = vld [vmem:[%s2 + $0x68] sm:$0xff]
    %v321 = vld [vmem:[%s2 + $0x70] sm:$0xff]
    %v322 = vld [vmem:[%s2 + $0x78] sm:$0xff]
    %v323 = vld [vmem:[%s2 + $0x80] sm:$0xff]
    %v324 = vld [vmem:[%s2 + $0x88] sm:$0xff]
    %v325 = vld [vmem:[%s2 + $0x90] sm:$0xff]
    %v326 = vld [vmem:[%s2 + $0x98] sm:$0xff]
    %v327 = vld [vmem:[%s2 + $0xa0] sm:$0xff]
    %v328 = vld [vmem:[%s2 + $0xa8] sm:$0xff]
    %v329 = vld [vmem:[%s2 + $0xb0] sm:$0xff]
    %v330 = vld [vmem:[%s2 + $0xb8] sm:$0xff]
    %v331 = vld [vmem:[%s2 + $0xc0] sm:$0xff]
    %v332 = vld [vmem:[%s2 + $0xc8] sm:$0xff]
    %v333 = vld [vmem:[%s2 + $0xd0] sm:$0xff]
    %v334 = vld [vmem:[%s2 + $0xd8] sm:$0xff]
    %v335 = vld [vmem:[%s2 + $0xe0] sm:$0xff]
    %v336 = vld [vmem:[%s2 + $0xe8] sm:$0xff]
    %v337 = vld [vmem:[%s2 + $0xf0] sm:$0xff]
    %v338 = vld [vmem:[%s2 + $0xf8] sm:$0xff]
    %v339 = vld [vmem:[%s2 + $0x100] sm:$0xff]
    %v340 = vld [vmem:[%s2 + $0x108] sm:$0xff]
    %v341 = vld [vmem:[%s2 + $0x110] sm:$0xff]
    %v342 = vld [vmem:[%s2 + $0x118] sm:$0xff]
    %v343 = vld [vmem:[%s2 + $0x120] sm:$0xff]
    %v344 = vld [vmem:[%s2 + $0x128] sm:$0xff]
    %v345 = vld [vmem:[%s2 + $0x130] sm:$0xff]
    %v346 = vld [vmem:[%s2 + $0x138] sm:$0xff]
    %v347 = vld [vmem:[%s2 + $0x140] sm:$0xff]
    %v348 = vld [vmem:[%s2 + $0x148] sm:$0xff]
    %v349 = vld [vmem:[%s2 + $0x150] sm:$0xff]
    %v350 = vld [vmem:[%s2 + $0x158] sm:$0xff]
    %v351 = vld [vmem:[%s2 + $0x160] sm:$0xff]
    %v352 = vld [vmem:[%s2 + $0x168] sm:$0xff]
    %v353 = vld [vmem:[%s2 + $0x170] sm:$0xff]
    %v354 = vld [vmem:[%s2 + $0x178] sm:$0xff]
    %v355 = vld [vmem:[%s2 + $0x180] sm:$0xff]
    %v356 = vld [vmem:[%s2 + $0x188] sm:$0xff]
    %v357 = vld [vmem:[%s2 + $0x190] sm:$0xff]
    %v358 = vld [vmem:[%s2 + $0x198] sm:$0xff]
    %v359 = vld [vmem:[%s2 + $0x1a0] sm:$0xff]
    %v360 = vld [vmem:[%s2 + $0x1a8] sm:$0xff]
    %v361 = vld [vmem:[%s2 + $0x1b0] sm:$0xff]
    %v362 = vld [vmem:[%s2 + $0x1b8] sm:$0xff]
    %v363 = vld [vmem:[%s2 + $0x1c0] sm:$0xff]
    %v364 = vld [vmem:[%s2 + $0x1c8] sm:$0xff]
    %v365 = vld [vmem:[%s2 + $0x1d0] sm:$0xff]
    %v366 = vld [vmem:[%s2 + $0x1d8] sm:$0xff]
    %v367 = vld [vmem:[%s2 + $0x1e0] sm:$0xff]
    %v368 = vld [vmem:[%s2 + $0x1e8] sm:$0xff]
    %v369 = vld [vmem:[%s2 + $0x1f0] sm:$0xff]
    %v370 = vld [vmem:[%s2 + $0x1f8] sm:$0xff]
    %v371 = vld [vmem:[%s3] sm:$0x1]
    %v373 = vlaneseq
    %v374 = vshrl.u32 %v373, 7
    %v375 = vsub.s32 0, %v374
    %v376 = vrot.slane %v371, %v375
    %378 = vmatprep.subr.mxu0 0.0
    %379 = vmatpush1.msra.mxu0 %v307
    %380 = vmatprep.subr.mxu0 0.0
    %381 = vmatpush1.msra.mxu0 %v308
    %382 = vmatprep.subr.mxu0 0.0
    %383 = vmatpush1.msra.mxu0 %v309
    %384 = vmatprep.subr.mxu0 0.0
    %385 = vmatpush1.msra.mxu0 %v310
    %386 = vmatprep.subr.mxu0 0.0
    %387 = vmatpush1.msra.mxu0 %v311
    %388 = vmatprep.subr.mxu0 0.0
    %389 = vmatpush1.msra.mxu0 %v312
    %390 = vmatprep.subr.mxu0 0.0
    %391 = vmatpush1.msra.mxu0 %v313
    %392 = vmatprep.subr.mxu0 0.0
    %393 = vmatpush1.msra.mxu0 %v314
    %394 = vmatprep.subr.mxu0 0.0
    %395 = vmatpush1.msra.mxu0 %v315
    %396 = vmatprep.subr.mxu0 0.0
    %397 = vmatpush1.msra.mxu0 %v316
    %398 = vmatprep.subr.mxu0 0.0
    %399 = vmatpush1.msra.mxu0 %v317
    %400 = vmatprep.subr.mxu0 0.0
    %401 = vmatpush1.msra.mxu0 %v318
    %402 = vmatprep.subr.mxu0 0.0
    %403 = vmatpush1.msra.mxu0 %v319
    %404 = vmatprep.subr.mxu0 0.0
    %405 = vmatpush1.msra.mxu0 %v320
    %406 = vmatprep.subr.mxu0 0.0
    %407 = vmatpush1.msra.mxu0 %v321
    %408 = vmatprep.subr.mxu0 0.0
    %409 = vmatpush1.msra.mxu0 %v322
    %410 = vmatprep.subr.mxu0 0.0
    %411 = vmatpush1.msra.mxu0 %v323
    %412 = vmatprep.subr.mxu0 0.0
    %413 = vmatpush1.msra.mxu0 %v324
    %414 = vmatprep.subr.mxu0 0.0
    %415 = vmatpush1.msra.mxu0 %v325
    %416 = vmatprep.subr.mxu0 0.0
    %417 = vmatpush1.msra.mxu0 %v326
    %418 = vmatprep.subr.mxu0 0.0
    %419 = vmatpush1.msra.mxu0 %v327
    %420 = vmatprep.subr.mxu0 0.0
    %421 = vmatpush1.msra.mxu0 %v328
    %422 = vmatprep.subr.mxu0 0.0
    %423 = vmatpush1.msra.mxu0 %v329
    %424 = vmatprep.subr.mxu0 0.0
    %425 = vmatpush1.msra.mxu0 %v330
    %426 = vmatprep.subr.mxu0 0.0
    %427 = vmatpush1.msra.mxu0 %v331
    %428 = vmatprep.subr.mxu0 0.0
    %429 = vmatpush1.msra.mxu0 %v332
    %430 = vmatprep.subr.mxu0 0.0
    %431 = vmatpush1.msra.mxu0 %v333
    %432 = vmatprep.subr.mxu0 0.0
    %433 = vmatpush1.msra.mxu0 %v334
    %434 = vmatprep.subr.mxu0 0.0
    %435 = vmatpush1.msra.mxu0 %v335
    %436 = vmatprep.subr.mxu0 0.0
    %437 = vmatpush1.msra.mxu0 %v336
    %438 = vmatprep.subr.mxu0 0.0
    %439 = vmatpush1.msra.mxu0 %v337
    %440 = vmatprep.subr.mxu0 0.0
    %441 = vmatpush1.msra.mxu0 %v338
    %442 = vmatprep.mubr.f32.mxu0 %v293
    %443 = vmatmul.mubr.f32.gmra.mrb[0].mxu0 %v287
    %v444 = vpop.f32.mrb[0].mxu0
    %v445 = vadd.f32 %v376, %v444
    %v446 = vpop.f32.mrb[0].mxu0
    %447 = vmatprep.mubr.f32.mxu0 %v294
    %448 = vmatmul.mubr.f32.gmra.mrb[0].mxu0 %v288
    %v449 = vpop.f32.mrb[0].mxu0
    %v450 = vadd.f32 %v376, %v449
    %v451 = vpop.f32.mrb[0].mxu0
    %452 = vdwg.mxu0
    %453 = vmatprep.subr.mxu0 0.0
    %454 = vmatpush1.msra.mxu0 %v339
    %455 = vmatprep.subr.mxu0 0.0
    %456 = vmatpush1.msra.mxu0 %v340
    %457 = vmatprep.subr.mxu0 0.0
    %458 = vmatpush1.msra.mxu0 %v341
    %459 = vmatprep.subr.mxu0 0.0
    %460 = vmatpush1.msra.mxu0 %v342
    %461 = vmatprep.subr.mxu0 0.0
    %462 = vmatpush1.msra.mxu0 %v343
    %463 = vmatprep.subr.mxu0 0.0
    %464 = vmatpush1.msra.mxu0 %v344
    %465 = vmatprep.subr.mxu0 0.0
    %466 = vmatpush1.msra.mxu0 %v345
    %467 = vmatprep.subr.mxu0 0.0
    %468 = vmatpush1.msra.mxu0 %v346
    %469 = vmatprep.subr.mxu0 0.0
    %470 = vmatpush1.msra.mxu0 %v347
    %471 = vmatprep.subr.mxu0 0.0
    %472 = vmatpush1.msra.mxu0 %v348
    %473 = vmatprep.subr.mxu0 0.0
    %474 = vmatpush1.msra.mxu0 %v349
    %475 = vmatprep.subr.mxu0 0.0
    %476 = vmatpush1.msra.mxu0 %v350
    %477 = vmatprep.subr.mxu0 0.0
    %478 = vmatpush1.msra.mxu0 %v351
    %479 = vmatprep.subr.mxu0 0.0
    %480 = vmatpush1.msra.mxu0 %v352
    %481 = vmatprep.subr.mxu0 0.0
    %482 = vmatpush1.msra.mxu0 %v353
    %483 = vmatprep.subr.mxu0 0.0
    %484 = vmatpush1.msra.mxu0 %v354
    %485 = vmatprep.subr.mxu0 0.0
    %486 = vmatpush1.msra.mxu0 %v355
    %487 = vmatprep.subr.mxu0 0.0
    %488 = vmatpush1.msra.mxu0 %v356
    %489 = vmatprep.subr.mxu0 0.0
    %490 = vmatpush1.msra.mxu0 %v357
    %491 = vmatprep.subr.mxu0 0.0
    %492 = vmatpush1.msra.mxu0 %v358
    %493 = vmatprep.subr.mxu0 0.0
    %494 = vmatpush1.msra.mxu0 %v359
    %495 = vmatprep.subr.mxu0 0.0
    %496 = vmatpush1.msra.mxu0 %v360
    %497 = vmatprep.subr.mxu0 0.0
    %498 = vmatpush1.msra.mxu0 %v361
    %499 = vmatprep.subr.mxu0 0.0
    %500 = vmatpush1.msra.mxu0 %v362
    %501 = vmatprep.subr.mxu0 0.0
    %502 = vmatpush1.msra.mxu0 %v363
    %503 = vmatprep.subr.mxu0 0.0
    %504 = vmatpush1.msra.mxu0 %v364
    %505 = vmatprep.subr.mxu0 0.0
    %506 = vmatpush1.msra.mxu0 %v365
    %507 = vmatprep.subr.mxu0 0.0
    %508 = vmatpush1.msra.mxu0 %v366
    %509 = vmatprep.subr.mxu0 0.0
    %510 = vmatpush1.msra.mxu0 %v367
    %511 = vmatprep.subr.mxu0 0.0
    %512 = vmatpush1.msra.mxu0 %v368
    %513 = vmatprep.subr.mxu0 0.0
    %514 = vmatpush1.msra.mxu0 %v369
    %515 = vmatprep.subr.mxu0 0.0
    %516 = vmatpush1.msra.mxu0 %v370
    %517 = vmatprep.mubr.f32.mxu0 %v305
    %518 = vmatmul.mubr.f32.gmra.mrb[0].mxu0 %v299
    %v519 = vpop.f32.mrb[0].mxu0
    %v520 = vadd.f32 %v445, %v519
    %v521 = vpop.f32.mrb[0].mxu0
    %522 = vmatprep.mubr.f32.mxu0 %v306
    %523 = vmatmul.mubr.f32.gmra.mrb[0].mxu0 %v300
    %v524 = vpop.f32.mrb[0].mxu0
    %v525 = vadd.f32 %v450, %v524
    %v526 = vpop.f32.mrb[0].mxu0
    %527 = vdwg.mxu0
    %v528 = vmax.f32 %v520, 0.0
    %v529 = vmax.f32 %v525, 0.0
    %v530 = vsel %vm283, %v528, -inf
    %v531 = vrot.slane %v530, 4
    %v532 = vmax.f32 %v530, %v531
    %v533 = vrot.slane %v532, 2
    %v534 = vmax.f32 %v532, %v533
    %v535 = vrot.slane %v534, 1
    %v536 = vmax.f32 %v534, %v535
    %v537 = vsel %vm283, %v529, -inf
    %v538 = vrot.slane %v537, 4
    %v539 = vmax.f32 %v537, %v538
    %v540 = vrot.slane %v539, 2
    %v541 = vmax.f32 %v539, %v540
    %v542 = vrot.slane %v541, 1
    %v543 = vmax.f32 %v541, %v542
    %vm546 = vcmask 1041409
    %v547 = vsel %vm546, %v543, %v536
    %vm549 = vcmask 517120
    %550 = vst.msk [vmem:[#allocation2] sm:$0x3] %vm549, %v547
    // Predicated region
    $region18: #{tpu_custom_call.1} parent=1 // pred_check
      _
    $region19: #{tpu_custom_call.1} parent=1 // pred_check_branch
      %552 = sbr.rel (0) target = $region21
    $region20: #{tpu_custom_call.1} parent=1 // pred_region
      %s554 = ssub.s32 32, 32
      %555 = vsyncadd [#allocation3], %s554
      %s557 = sshll.u32 [#allocation2], 4
      %s558 = int_to_ptr.vmem [resolvable:$true] %s557
      %560 = dma.vmem_to_hbm [thread:$0]  %s558, 32, %s4, [#allocation3]
    $region21: #{tpu_custom_call.1} parent=1 // pred_fallthru
      _
    // Predicated region
    $region22: #{tpu_custom_call.1} parent=1 // pred_check
      _
    $region23: #{tpu_custom_call.1} parent=1 // pred_check_branch
      %562 = sbr.rel (0) target = $region25
    $region24: #{tpu_custom_call.1} parent=1 // pred_region
      %563 = dma.done [#allocation3], 32
    $region25: #{tpu_custom_call.1} parent=1 // pred_fallthru
      _
    %564 = vsyncpa [#allocation3], 1

</llo_original>
